<compile_context>
chip_gen: v7x
topology: tpu7x:2x2x1
jax: 0.10.0
libtpu: 0.0.40
codegen_flags: <defaults>
</compile_context>

<pallas_src>
import functools
import itertools
import numpy as np

import jax
import jax.numpy as jnp
from jax.experimental import pallas as pl
from jax.experimental.pallas import tpu as pltpu


# ---------------------------------------------------------------------------
# Host-side combinatorics (identical semantics to the PyTorch helpers).
# ---------------------------------------------------------------------------
def is_ordered_permutation(perm):
    return all(perm[i] < perm[i + 1] for i in range(len(perm) - 1))


def get_permutations(num_sentences, size):
    sentences = np.arange(num_sentences)
    return [p for p in itertools.permutations(sentences, size)
            if is_ordered_permutation(p)]


def is_valid_followup_permutation(perm, prev_perms):
    for p in prev_perms:
        if len(perm - p) == 1:
            return True
    return False


def remove_duplicates(permutations):
    keep = []
    for perm in permutations:
        if perm not in keep:
            keep.append(perm)
    return keep


def _round_up(x, m):
    return ((x + m - 1) // m) * m


# ---------------------------------------------------------------------------
# Phase 1: per-sentence token sums (each sentence read from HBM once).
# ---------------------------------------------------------------------------
_SENT_TILE = 8  # sentences per grid step (sublane multiple)


def _sentence_sum_kernel(feat_ref, out_ref):
    # feat_ref: (TS, W, D); out_ref: (TS, D) — sum the tokens of each sentence.
    out_ref[...] = jnp.sum(feat_ref[...], axis=1)


def sentence_token_sums(features):
    """features: (S, W, D) -> (S8, D) f32 per-sentence token sums (S padded to 8)."""
    s, w, d = features.shape
    s8 = _round_up(s, _SENT_TILE)
    feats = jnp.pad(features.astype(jnp.float32),
                    ((0, s8 - s), (0, 0), (0, 0)))
    return pl.pallas_call(
        _sentence_sum_kernel,
        out_shape=jax.ShapeDtypeStruct((s8, d), jnp.float32),
        grid=(s8 // _SENT_TILE,),
        in_specs=[pl.BlockSpec((_SENT_TILE, w, d), lambda i: (i, 0, 0))],
        out_specs=pl.BlockSpec((_SENT_TILE, d), lambda i: (i, 0)),
        compiler_params=pltpu.CompilerParams(
            dimension_semantics=("parallel",)),
    )(feats)


# ---------------------------------------------------------------------------
# Phase 2: batched permutation pooling + projection (one-hot gather on MXU).
# ---------------------------------------------------------------------------
def _pool_project_kernel(memb_ref, sums_ref, w_ref, b_ref, out_ref, *,
                         inv_tokens):
    # memb_ref: (TP, SK) 0/1 sentence-membership rows for TP permutations
    # sums_ref: (SK, D)  per-sentence token sums (constant index map, resident)
    # w_ref:    (D, D), b_ref: (1, D) — aggregator projection
    # out_ref:  (TP, D)  lane/sublane-dense output slab (unmasked vst)
    pooled = jnp.dot(memb_ref[...], sums_ref[...],
                     preferred_element_type=jnp.float32)          # (TP, D) MXU
    mean = pooled * inv_tokens                                    # fold divisor
    # NOTE(v6e/v7x): casting `mean`/`w` to bf16 here (keeping f32 accumulation
    # via preferred_element_type) roughly doubles projection throughput at the
    # cost of bf16 rounding; kept f32 to preserve 1e-5 parity with the ref.
    proj = jnp.dot(mean, w_ref[...],
                   preferred_element_type=jnp.float32) + b_ref[...]
    out_ref[...] = jnp.tanh(proj).astype(out_ref.dtype)


def aggregate_permutations(sent_sums, membership, w, b, tokens_per_row,
                           perm_tile=128):
    """sent_sums: (SK, D) f32; membership: (P, SK) f32 -> (P, D) f32."""
    sk, d = sent_sums.shape
    p = membership.shape[0]
    p_pad = _round_up(max(p, 1), perm_tile)
    memb = jnp.pad(membership, ((0, p_pad - p), (0, 0)))

    kernel = functools.partial(_pool_project_kernel,
                               inv_tokens=1.0 / float(tokens_per_row))
    out = pl.pallas_call(
        kernel,
        out_shape=jax.ShapeDtypeStruct((p_pad, d), jnp.float32),
        grid=(p_pad // perm_tile,),
        in_specs=[
            pl.BlockSpec((perm_tile, sk), lambda i: (i, 0)),
            # The three operands below have constant index maps, so they are
            # revisited (not re-fetched) across grid steps.  At large `d`,
            # single-buffer them (pipeline_mode=pl.Buffered(1)) or DMA once
            # into scratch to halve their VMEM footprint; at d=128 the
            # default double-buffering is noise.
            pl.BlockSpec((sk, d), lambda i: (0, 0)),
            pl.BlockSpec((d, d), lambda i: (0, 0)),
            pl.BlockSpec((1, d), lambda i: (0, 0)),
        ],
        out_specs=pl.BlockSpec((perm_tile, d), lambda i: (i, 0)),
        compiler_params=pltpu.CompilerParams(
            # perm-tile axis is embarrassingly parallel (megacore / 2-TC v7x)
            dimension_semantics=("parallel",),
            # explicit VMEM budget; fits v7x's 32 MiB scoped default as well
            # as v5e/v6e
            vmem_limit_bytes=32 * 1024 * 1024,
        ),
    )(memb, sent_sums, w, b)
    return out[:p]


# ---------------------------------------------------------------------------
# Module equivalent.
# ---------------------------------------------------------------------------
class JointQueryMultiSentencePermutatorPallas:
    """Pallas equivalent of JointQueryMultiSentencePermutator.

    The abstract SentenceAggregator is instantiated as
        tanh(mean over all (step, word) tokens of the stacked embeddings @ W + b)
    """

    def __init__(self, dim, key):
        kw, kb = jax.random.split(key)
        self.dim = dim
        self.w = (jax.random.normal(kw, (dim, dim), jnp.float32)
                  / jnp.sqrt(jnp.float32(dim)))
        self.b = jax.random.normal(kb, (1, dim), jnp.float32) * 0.01

    def _sentence_table(self, features):
        """Per-sentence token sums, rows padded to a 128-aligned count (K-align)."""
        sums = sentence_token_sums(features)                  # (S8, D)
        sk = _round_up(sums.shape[0], 128)
        sums = jnp.pad(sums, ((0, sk - sums.shape[0]), (0, 0)))
        return sums, sk

    def forward(self, current_permutations, features, reasoning_steps):
        num_sentences, num_words, dim = features.shape

        # Host-side combinatorics — identical to the PyTorch module.
        permutations = get_permutations(num_sentences, reasoning_steps)
        current_sets = [set(p) for p in current_permutations]
        perm_sets = [set(p) for p in permutations]
        perm_sets = [p for p in perm_sets
                     if is_valid_followup_permutation(p, current_sets)]
        perm_sets = remove_duplicates(perm_sets)

        if not perm_sets:                       # zero-sized-grid guard
            return jnp.zeros((0, dim), jnp.float32), perm_sets

        sums, sk = self._sentence_table(features)

        # Each permutation (a set) becomes a 0/1 sentence-membership row; the
        # mean-pool aggregator is symmetric, so the order is irrelevant.
        membership = np.zeros((len(perm_sets), sk), np.float32)
        for i, perm in enumerate(perm_sets):
            membership[i, sorted(list(perm))] = 1.0

        # NOTE: like the original module, every sentence is assumed to hold
        # exactly `num_words` valid tokens (no per-sentence padding mask).
        aggregated = aggregate_permutations(
            sums, jnp.asarray(membership), self.w, self.b,
            tokens_per_row=reasoning_steps * num_words)
        return aggregated, perm_sets

    def forward_query(self, features):
        num_sentences, num_words, dim = features.shape
        sums, sk = self._sentence_table(features)
        membership = np.zeros((1, sk), np.float32)
        membership[0, :num_sentences] = 1.0
        return aggregate_permutations(
            sums, jnp.asarray(membership), self.w, self.b,
            tokens_per_row=num_sentences * num_words)


# ---------------------------------------------------------------------------
# Pure-JAX references for verification.
# ---------------------------------------------------------------------------
def _reference_forward(features, perm_sets, w, b):
    perm_table = jnp.asarray(
        np.array([sorted(list(p)) for p in perm_sets], dtype=np.int32))
    gathered = features[perm_table]                 # (P, R, W, D)
    mean = gathered.mean(axis=(1, 2))               # (P, D)
    return jnp.tanh(mean @ w + b)


def _reference_query(features, w, b):
    mean = features.mean(axis=(0, 1))[None, :]      # (1, D)
    return jnp.tanh(mean @ w + b)


if __name__ == "__main__":
    key = jax.random.PRNGKey(0)
    k_feat, k_mod = jax.random.split(key)

    num_sentences, num_words, dim = 6, 8, 128
    reasoning_steps = 2
    features = jax.random.normal(k_feat, (num_sentences, num_words, dim),
                                 jnp.float32)

    module = JointQueryMultiSentencePermutatorPallas(dim, k_mod)

    # previous best permutations of length reasoning_steps - 1
    current_permutations = [(0,), (3,)]

    aggregated, perms = module.forward(current_permutations, features,
                                       reasoning_steps)
    aggregated = jax.block_until_ready(aggregated)

    # also exercise forward_query once
    q_out = jax.block_until_ready(module.forward_query(features))

    # correctness checks against pure-JAX references
    ref = _reference_forward(features, perms, module.w, module.b)
    ref_q = _reference_query(features, module.w, module.b)

    assert aggregated.shape == (len(perms), dim)
    assert q_out.shape == (1, dim)
    np.testing.assert_allclose(np.asarray(aggregated), np.asarray(ref),
                               rtol=1e-5, atol=1e-5)
    np.testing.assert_allclose(np.asarray(q_out), np.asarray(ref_q),
                               rtol=1e-5, atol=1e-5)

    print("KERNEL_OK")
</pallas_src>

<mosaic_0001>
module attributes {stable_mosaic.version = 11 : i64} {
  func.func @_sentence_sum_kernel(%arg0: i32, %arg1: memref<8x8x128xf32, #tpu.memory_space<vmem>>, %arg2: memref<8x128xf32, #tpu.memory_space<vmem>>) attributes {dimension_semantics = [#tpu.dimension_semantics<parallel>], iteration_bounds = array<i64: 1>, scalar_prefetch = 0 : i64, scratch_operands = 0 : i64, tpu.core_type = #tpu.core_type<tc>, window_params = [{transform_indices = @transform_0, window_bounds = array<i64: 8, 8, 128>}, {transform_indices = @transform_1, window_bounds = array<i64: 8, 128>}]} {
    %c0 = arith.constant 0 : index
    %c0_0 = arith.constant 0 : index
    %c0_1 = arith.constant 0 : index
    %0 = vector.load %arg1[%c0, %c0_0, %c0_1] : memref<8x8x128xf32, #tpu.memory_space<vmem>>, vector<8x8x128xf32>
    %cst = arith.constant dense<0.000000e+00> : vector<8x128xf32>
    %1 = vector.multi_reduction <add>, %0, %cst [1] : vector<8x8x128xf32> to vector<8x128xf32>
    %c0_2 = arith.constant 0 : index
    %c0_3 = arith.constant 0 : index
    %2 = vector.load %arg2[%c0_2, %c0_3] : memref<8x128xf32, #tpu.memory_space<vmem>>, vector<8x128xf32>
    tpu.vector_store %arg2[%c0_2, %c0_3], %1 {strides = array<i32>} : memref<8x128xf32, #tpu.memory_space<vmem>>, vector<8x128xf32>,
    return
  }
  func.func @transform_0(%arg0: i32) -> (i32, i32, i32) {
    %c0_i32 = arith.constant 0 : i32
    %c0_i32_0 = arith.constant 0 : i32
    %c0_i32_1 = arith.constant 0 : i32
    return %arg0, %c0_i32, %c0_i32_0 : i32, i32, i32
  }
  func.func @transform_1(%arg0: i32) -> (i32, i32) {
    %c0_i32 = arith.constant 0 : i32
    %c0_i32_0 = arith.constant 0 : i32
    return %arg0, %c0_i32 : i32, i32
  }
}

</mosaic_0001>

<llo_original>
// kernel: tpu_custom_call.1
$region0: #{tpu_custom_call.1}
  #allocation0 [shape = 'u32[]', space=smem, size = 0x4, offset = 0x4, fixed_abs, tag = 'smem constant byte address 0x4 - core index']
  #allocation1 [shape = 'u32[144,128]{1,0:T(1,128)}', space=vmem, size = 0x12000, scoped, tag = 'internal scratch']
  %s0 = inlined_call_operand.hbm [shape: f32[8,8,128], index: 0, kind: input, shape index: {}]
  %s1 = inlined_call_operand.hbm [shape: f32[8,128], index: 1, kind: output, shape index: {}]
  %s2 = sld [smem:[#allocation0]]
  $region18: #{tpu_custom_call.1} parent=0
    _
  %s4 = ssub.s32 1, %s2
  %s5 = scalar_select 0, %s4, %s2
  $region1: #{tpu_custom_call.1} parent=0
    #allocation2 [shape = 'u8[32768]{0}', space=vmem, size = 0x8000, scoped, tag = 'input window, operand 0, single buffered']
    #allocation3 [shape = 's32[1]{0}', space=sflag, size = 0x4, scoped, tag = 'scoped memory for tpu_custom_call.1']
    #allocation4 [shape = 's32[1]{0}', space=sflag, size = 0x4, scoped, tag = 'scoped memory for tpu_custom_call.1']
    #allocation5 [shape = 'u8[4096]{0}', space=vmem, size = 0x1000, scoped, tag = 'output window, operand 0, single buffered']
    %6 = vsyncpa [#allocation3], 0
    %7 = vsyncpa [#allocation4], 0
    // Predicated region
    $region2: #{tpu_custom_call.1} parent=1 // pred_check
      _
    $region3: #{tpu_custom_call.1} parent=1 // pred_check_branch
      %9 = sbr.rel (0) target = $region5
    $region4: #{tpu_custom_call.1} parent=1 // pred_region
      %s11 = ssub.s32 1024, 1024
      %12 = vsyncadd [#allocation3], %s11
      %s13 = sshll.u32 [#allocation2], 4
      %s14 = int_to_ptr.vmem [resolvable:$true] %s13
      %19 = dma.hbm_to_vmem [thread:$0]  %s0, 1024, %s14, [#allocation3], 128, 128, 8
    $region5: #{tpu_custom_call.1} parent=1 // pred_fallthru
      _
    // Predicated region
    $region6: #{tpu_custom_call.1} parent=1 // pred_check
      _
    $region7: #{tpu_custom_call.1} parent=1 // pred_check_branch
      %21 = sbr.rel (0) target = $region9
    $region8: #{tpu_custom_call.1} parent=1 // pred_region
      %22 = dma.done [#allocation3], 1024
    $region9: #{tpu_custom_call.1} parent=1 // pred_fallthru
      _
    %v23 = vld [vmem:[#allocation2] sm:$0xff]
    %v24 = vld [vmem:[#allocation2 + $0x8] sm:$0xff]
    %v25 = vld [vmem:[#allocation2 + $0x10] sm:$0xff]
    %v26 = vld [vmem:[#allocation2 + $0x18] sm:$0xff]
    %v27 = vld [vmem:[#allocation2 + $0x20] sm:$0xff]
    %v28 = vld [vmem:[#allocation2 + $0x28] sm:$0xff]
    %v29 = vld [vmem:[#allocation2 + $0x30] sm:$0xff]
    %v30 = vld [vmem:[#allocation2 + $0x38] sm:$0xff]
    %v31 = vrot.slane %v23, 4
    %v32 = vadd.f32 %v23, %v31
    %v33 = vrot.slane %v32, 2
    %v34 = vadd.f32 %v32, %v33
    %v35 = vrot.slane %v34, 1
    %v36 = vadd.f32 %v34, %v35
    %v37 = vrot.slane %v24, 4
    %v38 = vadd.f32 %v24, %v37
    %v39 = vrot.slane %v38, 2
    %v40 = vadd.f32 %v38, %v39
    %v41 = vrot.slane %v40, 1
    %v42 = vadd.f32 %v40, %v41
    %v43 = vrot.slane %v25, 4
    %v44 = vadd.f32 %v25, %v43
    %v45 = vrot.slane %v44, 2
    %v46 = vadd.f32 %v44, %v45
    %v47 = vrot.slane %v46, 1
    %v48 = vadd.f32 %v46, %v47
    %v49 = vrot.slane %v26, 4
    %v50 = vadd.f32 %v26, %v49
    %v51 = vrot.slane %v50, 2
    %v52 = vadd.f32 %v50, %v51
    %v53 = vrot.slane %v52, 1
    %v54 = vadd.f32 %v52, %v53
    %v55 = vrot.slane %v27, 4
    %v56 = vadd.f32 %v27, %v55
    %v57 = vrot.slane %v56, 2
    %v58 = vadd.f32 %v56, %v57
    %v59 = vrot.slane %v58, 1
    %v60 = vadd.f32 %v58, %v59
    %v61 = vrot.slane %v28, 4
    %v62 = vadd.f32 %v28, %v61
    %v63 = vrot.slane %v62, 2
    %v64 = vadd.f32 %v62, %v63
    %v65 = vrot.slane %v64, 1
    %v66 = vadd.f32 %v64, %v65
    %v67 = vrot.slane %v29, 4
    %v68 = vadd.f32 %v29, %v67
    %v69 = vrot.slane %v68, 2
    %v70 = vadd.f32 %v68, %v69
    %v71 = vrot.slane %v70, 1
    %v72 = vadd.f32 %v70, %v71
    %v73 = vrot.slane %v30, 4
    %v74 = vadd.f32 %v30, %v73
    %v75 = vrot.slane %v74, 2
    %v76 = vadd.f32 %v74, %v75
    %v77 = vrot.slane %v76, 1
    %v78 = vadd.f32 %v76, %v77
    %vm87 = vcmask 1041409
    %v88 = vsel %vm87, %v42, %v36
    %vm89 = vcmask 1042434
    %v90 = vsel %vm89, %v48, %v88
    %vm91 = vcmask 1043459
    %v92 = vsel %vm91, %v54, %v90
    %vm93 = vcmask 1044484
    %v94 = vsel %vm93, %v60, %v92
    %vm95 = vcmask 1045509
    %v96 = vsel %vm95, %v66, %v94
    %vm97 = vcmask 1046534
    %v98 = vsel %vm97, %v72, %v96
    %vm99 = vcmask 1047559
    %v100 = vsel %vm99, %v78, %v98
    %102 = vst [vmem:[#allocation5] sm:$0xff] %v100
    // Predicated region
    $region10: #{tpu_custom_call.1} parent=1 // pred_check
      _
    $region11: #{tpu_custom_call.1} parent=1 // pred_check_branch
      %104 = sbr.rel (0) target = $region13
    $region12: #{tpu_custom_call.1} parent=1 // pred_region
      %s106 = ssub.s32 128, 128
      %107 = vsyncadd [#allocation4], %s106
      %s109 = sshll.u32 [#allocation5], 4
      %s110 = int_to_ptr.vmem [resolvable:$true] %s109
      %112 = dma.vmem_to_hbm [thread:$0]  %s110, 128, %s1, [#allocation4]
    $region13: #{tpu_custom_call.1} parent=1 // pred_fallthru
      _
    // Predicated region
    $region14: #{tpu_custom_call.1} parent=1 // pred_check
      _
    $region15: #{tpu_custom_call.1} parent=1 // pred_check_branch
      %114 = sbr.rel (0) target = $region17
    $region16: #{tpu_custom_call.1} parent=1 // pred_region
      %115 = dma.done [#allocation4], 128
    $region17: #{tpu_custom_call.1} parent=1 // pred_fallthru
      _
    %116 = vsyncpa [#allocation3], 1
    %117 = vsyncpa [#allocation4], 1

</llo_original>
